<compile_context>
chip_gen: v7x
topology: tpu7x:2x2x1
jax: 0.10.0
libtpu: 0.0.40
codegen_flags: <defaults>
</compile_context>

<pallas_src>
import math
from collections import OrderedDict

import jax
import jax.numpy as jnp
from jax.experimental import pallas as pl
from jax.experimental.pallas import tpu as pltpu


def _copy_kernel(x_ref, o_ref):
    # Pure pass-through: the abstract module defines no forward compute.
    o_ref[...] = x_ref[...]


def _sublane_multiple(dtype) -> int:
    # f32/i32 -> 8, bf16/f16 -> 16, int8/fp8 -> 32 (packed sublane tiling).
    itemsize = jnp.dtype(dtype).itemsize
    return max(8, 32 // itemsize)


def _pick_lane_width(total_elems: int) -> int:
    # Largest lane-dense width (multiple of 128) that evenly divides the
    # total element count; 0 if none exists (caller pads in that case).
    for lane in (2048, 1024, 512, 256, 128):
        if total_elems % lane == 0:
            return lane
    return 0


def _forward_impl(x: jax.Array) -> jax.Array:
    orig_shape = x.shape
    dtype = x.dtype
    itemsize = jnp.dtype(dtype).itemsize
    total = int(math.prod(orig_shape)) if len(orig_shape) > 0 else 1

    # Degenerate inputs: nothing worth launching a kernel for.
    if x.ndim == 0 or total == 0:
        return x

    flat = x.reshape(total)

    # Lane-dense layout: lane is always a multiple of 128 so stores are full
    # unmasked vst and DMA bursts are full width.  Pad (cheap XLA pad) when
    # the element count does not divide evenly, and slice the tail off after.
    lane = _pick_lane_width(total)
    padded_total = total
    if lane == 0:
        lane = 128
        padded_total = ((total + lane - 1) // lane) * lane
        flat = jnp.pad(flat, (0, padded_total - total))
    rows = padded_total // lane
    x2d = flat.reshape(rows, lane)

    # Tile sizing: ~4 MiB per tile.  Double-buffered in + out => ~16 MiB,
    # under the explicit 48 MiB scoped-VMEM limit below on every generation
    # (v5e/v6e physical 128 MiB, v7x physical 64 MiB).
    sub = _sublane_multiple(dtype)
    bytes_per_row = max(1, lane * itemsize)
    target_rows = (4 * 1024 * 1024) // bytes_per_row
    tm = max(sub, (target_rows // sub) * sub)
    if tm >= rows:
        tm = rows  # single full-extent block: always layout-legal

    grid = (pl.cdiv(rows, tm),)

    out2d = pl.pallas_call(
        _copy_kernel,
        out_shape=jax.ShapeDtypeStruct((rows, lane), dtype),
        grid_spec=pltpu.PrefetchScalarGridSpec(
            num_scalar_prefetch=0,
            grid=grid,
            in_specs=[pl.BlockSpec((tm, lane), lambda i: (i, 0))],
            out_specs=pl.BlockSpec((tm, lane), lambda i: (i, 0)),
        ),
        compiler_params=pltpu.CompilerParams(
            dimension_semantics=("parallel",),
            vmem_limit_bytes=48 << 20,
        ),
        cost_estimate=pl.CostEstimate(
            flops=0,
            transcendentals=0,
            bytes_accessed=2 * padded_total * itemsize,
        ),
    )(x2d)

    out = out2d.reshape(padded_total)
    if padded_total != total:
        out = out[:total]
    return out.reshape(orig_shape)


# Pallas copy path (used when you explicitly want the TPU kernel exercised).
abstract_module_forward = jax.jit(_forward_impl)


class AbstractModulePallas:
    """JAX/Pallas mirror of torchdrum.synth.AbstractModule."""

    def __init__(self, sample_rate: int):
        self.sample_rate = sample_rate
        self.normalizers = OrderedDict()  # empty, as in the PyTorch module

    def __call__(self, x: jax.Array) -> jax.Array:
        # TODO(synk): PyTorch forward() raises NotImplementedError (abstract).
        # The optimal concrete stand-in is a zero-cost identity: return x
        # directly (no HBM traffic, no launch).  Use `abstract_module_forward`
        # to run the explicit Pallas copy kernel instead.
        return x


if __name__ == "__main__":
    key = jax.random.PRNGKey(0)
    x = jax.random.normal(key, (2, 4, 16, 16), dtype=jnp.float32)

    # Exercise the Pallas kernel path explicitly.
    y_kernel = jax.block_until_ready(abstract_module_forward(x))
    assert y_kernel.shape == x.shape
    assert y_kernel.dtype == x.dtype
    assert bool(jnp.allclose(y_kernel, x)), "pallas identity mismatch"

    # Module forward: zero-cost identity short-circuit (per perf review).
    module = AbstractModulePallas(sample_rate=44100)
    y_fast = jax.block_until_ready(module(x))
    assert y_fast.shape == x.shape
    assert bool(jnp.allclose(y_fast, x)), "fast-path identity mismatch"

    print("KERNEL_OK")
</pallas_src>

<mosaic_0001>
module attributes {stable_mosaic.version = 11 : i64} {
  func.func @_copy_kernel(%arg0: i32, %arg1: memref<1x2048xf32, #tpu.memory_space<vmem>>, %arg2: memref<1x2048xf32, #tpu.memory_space<vmem>>) attributes {dimension_semantics = [#tpu.dimension_semantics<parallel>], iteration_bounds = array<i64: 1>, scalar_prefetch = 0 : i64, scratch_operands = 0 : i64, tpu.core_type = #tpu.core_type<tc>, window_params = [{transform_indices = @transform_0, window_bounds = array<i64: 1, 2048>}, {transform_indices = @transform_1, window_bounds = array<i64: 1, 2048>}]} {
    %c0 = arith.constant 0 : index
    %c0_0 = arith.constant 0 : index
    %0 = vector.load %arg1[%c0, %c0_0] : memref<1x2048xf32, #tpu.memory_space<vmem>>, vector<1x2048xf32>
    %c0_1 = arith.constant 0 : index
    %c0_2 = arith.constant 0 : index
    %1 = vector.load %arg2[%c0_1, %c0_2] : memref<1x2048xf32, #tpu.memory_space<vmem>>, vector<1x2048xf32>
    tpu.vector_store %arg2[%c0_1, %c0_2], %0 {strides = array<i32>} : memref<1x2048xf32, #tpu.memory_space<vmem>>, vector<1x2048xf32>,
    return
  }
  func.func @transform_0(%arg0: i32) -> (i32, i32) {
    %c0_i32 = arith.constant 0 : i32
    %c0_i32_0 = arith.constant 0 : i32
    return %arg0, %c0_i32 : i32, i32
  }
  func.func @transform_1(%arg0: i32) -> (i32, i32) {
    %c0_i32 = arith.constant 0 : i32
    %c0_i32_0 = arith.constant 0 : i32
    return %arg0, %c0_i32 : i32, i32
  }
}

</mosaic_0001>

<llo_original>
// kernel: _forward_impl.1
$region0: #{_forward_impl.1}
  #allocation0 [shape = 'u32[]', space=smem, size = 0x4, offset = 0x4, fixed_abs, tag = 'smem constant byte address 0x4 - core index']
  #allocation1 [shape = 'u32[144,128]{1,0:T(1,128)}', space=vmem, size = 0x12000, scoped, tag = 'internal scratch']
  %s0 = inlined_call_operand.vmem [shape: f32[1,2048], index: 0, kind: input, shape index: {}]
  %s1 = inlined_call_operand.vmem [shape: f32[1,2048], index: 1, kind: output, shape index: {}]
  %s2 = sld [smem:[#allocation0]]
  $region14: #{_forward_impl.1} parent=0
    _
  %s4 = ssub.s32 1, %s2
  %s5 = scalar_select 0, %s4, %s2
  // Predicated region
  $region2: #{_forward_impl.1} parent=0 // pred_check
    _
  $region3: #{_forward_impl.1} parent=0 // pred_check_branch
    %7 = sbr.rel (0) target = $region5
  $region4: #{_forward_impl.1} parent=0 // pred_region
    _
  $region5: #{_forward_impl.1} parent=0 // pred_fallthru
    _
  %v8 = vld [vmem:[%s0] sm:$0xff]
  %v9 = vld [vmem:[%s0 + $0x8] sm:$0xff]
  %10 = vst [vmem:[%s1] sm:$0xff] %v8
  %11 = vst [vmem:[%s1 + $0x8] sm:$0xff] %v9
  // Predicated region
  $region6: #{_forward_impl.1} parent=0 // pred_check
    _
  $region7: #{_forward_impl.1} parent=0 // pred_check_branch
    %13 = sbr.rel (0) target = $region9
  $region8: #{_forward_impl.1} parent=0 // pred_region
    _
  $region9: #{_forward_impl.1} parent=0 // pred_fallthru
    _
  // Predicated region
  $region10: #{_forward_impl.1} parent=0 // pred_check
    _
  $region11: #{_forward_impl.1} parent=0 // pred_check_branch
    %15 = sbr.rel (0) target = $region13
  $region12: #{_forward_impl.1} parent=0 // pred_region
    _
  $region13: #{_forward_impl.1} parent=0 // pred_fallthru
    _

</llo_original>
